<compile_context>
chip_gen: v7x
topology: tpu7x:2x2x1
jax: 0.10.0
libtpu: 0.0.40
codegen_flags: <defaults>
</compile_context>

<pallas_src>
import functools

import jax
import jax.numpy as jnp
from jax.experimental import pallas as pl
from jax.experimental.pallas import tpu as pltpu


_SUBLANE = 8
_LANE = 128
_DEFAULT_TK = 2048  # contraction tile cap; sized for v7x's 64 MiB VMEM


def _round_up(x, m):
    return (x + m - 1) // m * m


# ---------------------------------------------------------------------------
# Kernels
# ---------------------------------------------------------------------------
def _gram_kernel(f_ref, g_ref, acc_ref, *, inv_norm):
    """Accumulate F @ F^T over K tiles; write normalized Gram on the last step."""
    k = pl.program_id(0)

    @pl.when(k == 0)
    def _():
        acc_ref[...] = jnp.zeros_like(acc_ref)

    f = f_ref[...]
    # Contract both operands on the lane axis -> maps straight onto the MXU,
    # no transpose / relayout of the feature tile.
    acc_ref[...] += jax.lax.dot_general(
        f, f,
        dimension_numbers=(((1,), (1,)), ((), ())),
        preferred_element_type=jnp.float32,
    )

    @pl.when(k == pl.num_programs(0) - 1)
    def _():
        g_ref[...] = acc_ref[...] * inv_norm


def _style_loss_kernel(f_ref, t_ref, o_ref, acc_ref, *, inv_norm, inv_count):
    """Fused gram(y) accumulation + MSE-vs-target epilogue (last K step only)."""
    k = pl.program_id(0)

    @pl.when(k == 0)
    def _():
        acc_ref[...] = jnp.zeros_like(acc_ref)

    f = f_ref[...]
    acc_ref[...] += jax.lax.dot_general(
        f, f,
        dimension_numbers=(((1,), (1,)), ((), ())),
        preferred_element_type=jnp.float32,
    )

    @pl.when(k == pl.num_programs(0) - 1)
    def _():
        diff = acc_ref[...] * inv_norm - t_ref[...]
        o_ref[0, 0] = jnp.sum(diff * diff) * inv_count


# ---------------------------------------------------------------------------
# Wrappers
# ---------------------------------------------------------------------------
def _prep_features(x, tk):
    """NCHW -> (N_pad, M_pad) features (zero padded), plus tiling metadata."""
    a, b, c, d = x.shape
    n, m = a * b, c * d
    norm = float(a * b * c * d)
    feats = x.reshape(n, m)

    n_pad = _round_up(n, _SUBLANE)
    tk = _round_up(min(tk, _round_up(m, _LANE)), _LANE)
    m_pad = _round_up(m, tk)
    if (n_pad, m_pad) != (n, m):
        feats = jnp.pad(feats, ((0, n_pad - n), (0, m_pad - m)))
    return feats, n, n_pad, m_pad, tk, norm


def _vmem_limit_bytes(n_pad, tk, itemsize, extra_f32_elems):
    # double-buffered feature stream + resident f32 buffers, with headroom;
    # never request more than is physically safe on v7x (64 MiB per TC).
    need = 2 * n_pad * tk * itemsize + 4 * extra_f32_elems
    return int(min(max(2 * need, 32 * 1024 * 1024), 48 * 1024 * 1024))


def _gram_padded(x, tk):
    """Padded (N_pad, N_pad) f32 Gram matrix of an NCHW tensor."""
    feats, n, n_pad, m_pad, tk, norm = _prep_features(x, tk)
    grid_k = m_pad // tk
    itemsize = feats.dtype.itemsize
    kernel = functools.partial(_gram_kernel, inv_norm=1.0 / norm)

    g = pl.pallas_call(
        kernel,
        out_shape=jax.ShapeDtypeStruct((n_pad, n_pad), jnp.float32),
        grid_spec=pltpu.PrefetchScalarGridSpec(
            num_scalar_prefetch=0,
            grid=(grid_k,),
            in_specs=[pl.BlockSpec((n_pad, tk), lambda k: (0, k))],
            out_specs=pl.BlockSpec((n_pad, n_pad), lambda k: (0, 0)),
            scratch_shapes=[pltpu.VMEM((n_pad, n_pad), jnp.float32)],
        ),
        compiler_params=pltpu.CompilerParams(
            dimension_semantics=("arbitrary",),
            vmem_limit_bytes=_vmem_limit_bytes(
                n_pad, tk, itemsize, 3 * n_pad * n_pad),
        ),
        cost_estimate=pl.CostEstimate(
            flops=2 * n_pad * n_pad * m_pad,
            transcendentals=0,
            bytes_accessed=n_pad * m_pad * itemsize + n_pad * n_pad * 4,
        ),
    )(feats)
    return g, n


def gram_matrix_pallas(x, *, tk=_DEFAULT_TK):
    """Gram matrix of an NCHW tensor (unpadded (a*b, a*b) result)."""
    g, n = _gram_padded(x, tk)
    return g[:n, :n]


def style_loss_forward(y, target_gram_padded, *, tk=_DEFAULT_TK):
    """Fused: gram(y) + MSE against the precomputed (padded) target gram."""
    feats, n, n_pad, m_pad, tk, norm = _prep_features(y, tk)
    assert target_gram_padded.shape == (n_pad, n_pad), (
        "target gram / input gram size mismatch (y must match the style target "
        "layout, as in the PyTorch module)")
    grid_k = m_pad // tk
    itemsize = feats.dtype.itemsize
    kernel = functools.partial(
        _style_loss_kernel,
        inv_norm=1.0 / norm,
        inv_count=1.0 / float(n * n),
    )

    out = pl.pallas_call(
        kernel,
        out_shape=jax.ShapeDtypeStruct((1, 1), jnp.float32),
        grid_spec=pltpu.PrefetchScalarGridSpec(
            num_scalar_prefetch=0,
            grid=(grid_k,),
            in_specs=[
                pl.BlockSpec((n_pad, tk), lambda k: (0, k)),       # streamed
                pl.BlockSpec((n_pad, n_pad), lambda k: (0, 0)),    # resident target
            ],
            out_specs=pl.BlockSpec((1, 1), lambda k: (0, 0)),
            scratch_shapes=[pltpu.VMEM((n_pad, n_pad), jnp.float32)],
        ),
        compiler_params=pltpu.CompilerParams(
            dimension_semantics=("arbitrary",),
            vmem_limit_bytes=_vmem_limit_bytes(
                n_pad, tk, itemsize, 4 * n_pad * n_pad),
        ),
        cost_estimate=pl.CostEstimate(
            flops=2 * n_pad * n_pad * m_pad + 3 * n_pad * n_pad,
            transcendentals=0,
            bytes_accessed=n_pad * m_pad * itemsize + n_pad * n_pad * 4 + 4,
        ),
    )(feats, target_gram_padded.astype(jnp.float32))
    return out[0, 0]


class StyleLossPallas:
    """JAX/Pallas equivalent of the PyTorch style_loss module."""

    def __init__(self, x, *, tk=_DEFAULT_TK):
        # target = gram_matrix(x).detach()  (kept padded + f32 for the fused kernel)
        self._tk = tk
        self.target, self._n = _gram_padded(x, tk)

    def __call__(self, y):
        a, b, c, d = y.shape
        assert a * b == self._n, (
            "y must produce the same Gram size (a*b) as the style target")
        return style_loss_forward(y, self.target, tk=self._tk)


# ---------------------------------------------------------------------------
# Reference (plain JAX) for sanity checking
# ---------------------------------------------------------------------------
def _gram_ref(x):
    a, b, c, d = x.shape
    f = x.reshape(a * b, c * d).astype(jnp.float32)
    return (f @ f.T) / float(a * b * c * d)


def _loss_ref(y, target):
    g = _gram_ref(y)
    return jnp.mean((g - target) ** 2)


if __name__ == "__main__":
    # Small shapes consistent with the module: NCHW image tensors.
    key = jax.random.PRNGKey(0)
    kx, ky = jax.random.split(key)
    x = jax.random.normal(kx, (2, 4, 16, 16), dtype=jnp.float32)  # style target
    y = jax.random.normal(ky, (2, 4, 16, 16), dtype=jnp.float32)  # input image

    # tk=128 -> M=256 gives grid=(2,), exercising the K-tiled accumulator path.
    module = StyleLossPallas(x, tk=128)
    loss = jax.block_until_ready(module(y))

    # Correctness checks vs plain-JAX reference.
    ref = _loss_ref(y, _gram_ref(x))
    assert jnp.allclose(loss, ref, rtol=1e-5, atol=1e-6), (loss, ref)

    g = jax.block_until_ready(gram_matrix_pallas(x, tk=128))
    assert jnp.allclose(g, _gram_ref(x), rtol=1e-5, atol=1e-6)

    print("KERNEL_OK")
</pallas_src>

<mosaic_0001>
module attributes {stable_mosaic.version = 11 : i64} {
  func.func @_gram_kernel(%arg0: i32, %arg1: memref<8x128xf32, #tpu.memory_space<vmem>>, %arg2: memref<8x8xf32, #tpu.memory_space<vmem>>, %arg3: memref<8x8xf32, #tpu.memory_space<vmem>>) attributes {dimension_semantics = [#tpu.dimension_semantics<arbitrary>], iteration_bounds = array<i64: 2>, scalar_prefetch = 0 : i64, scratch_operands = 1 : i64, tpu.core_type = #tpu.core_type<tc>, window_params = [{transform_indices = @transform_0, window_bounds = array<i64: 8, 128>}, {pipeline_mode = #tpu.pipeline_mode<synchronous>, transform_indices = @transform_1, window_bounds = array<i64: 8, 8>}]} {
    %c0_i32 = arith.constant 0 : i32
    %0 = arith.cmpi eq, %arg0, %c0_i32 : i32
    %1 = arith.extui %0 : i1 to i32
    %c0_i32_0 = arith.constant 0 : i32
    %2 = arith.cmpi ne, %1, %c0_i32_0 : i32
    scf.if %2 {
      %cst_7 = arith.constant 0.000000e+00 : f32
      %11 = vector.broadcast %cst_7 : f32 to vector<8x8xf32>
      %c0_8 = arith.constant 0 : index
      %c0_9 = arith.constant 0 : index
      %12 = vector.load %arg3[%c0_8, %c0_9] : memref<8x8xf32, #tpu.memory_space<vmem>>, vector<8x8xf32>
      tpu.vector_store %arg3[%c0_8, %c0_9], %11 {strides = array<i32>} : memref<8x8xf32, #tpu.memory_space<vmem>>, vector<8x8xf32>,
    } else {
    }
    %c0 = arith.constant 0 : index
    %c0_1 = arith.constant 0 : index
    %3 = vector.load %arg1[%c0, %c0_1] : memref<8x128xf32, #tpu.memory_space<vmem>>, vector<8x128xf32>
    %c0_2 = arith.constant 0 : index
    %c0_3 = arith.constant 0 : index
    %4 = vector.load %arg3[%c0_2, %c0_3] : memref<8x8xf32, #tpu.memory_space<vmem>>, vector<8x8xf32>
    %cst = arith.constant dense<0.000000e+00> : vector<8x8xf32>
    %5 = tpu.matmul %3, %3, %cst {dimension_numbers = #tpu.dot_dimension_numbers<[1], [1], [0], [0], [0, 0, 1, 0], [], []>} : vector<8x128xf32>, vector<8x128xf32>, vector<8x8xf32> -> vector<8x8xf32>
    %6 = arith.addf %4, %5 : vector<8x8xf32>
    %c0_4 = arith.constant 0 : index
    %c0_5 = arith.constant 0 : index
    %7 = vector.load %arg3[%c0_4, %c0_5] : memref<8x8xf32, #tpu.memory_space<vmem>>, vector<8x8xf32>
    tpu.vector_store %arg3[%c0_4, %c0_5], %6 {strides = array<i32>} : memref<8x8xf32, #tpu.memory_space<vmem>>, vector<8x8xf32>,
    %c1_i32 = arith.constant 1 : i32
    %8 = arith.cmpi eq, %arg0, %c1_i32 : i32
    %9 = arith.extui %8 : i1 to i32
    %c0_i32_6 = arith.constant 0 : i32
    %10 = arith.cmpi ne, %9, %c0_i32_6 : i32
    scf.if %10 {
      %c0_7 = arith.constant 0 : index
      %c0_8 = arith.constant 0 : index
      %11 = vector.load %arg3[%c0_7, %c0_8] : memref<8x8xf32, #tpu.memory_space<vmem>>, vector<8x8xf32>
      %cst_9 = arith.constant 4.8828125E-4 : f32
      %12 = vector.broadcast %cst_9 : f32 to vector<8x8xf32>
      %13 = arith.mulf %11, %12 : vector<8x8xf32>
      %c0_10 = arith.constant 0 : index
      %c0_11 = arith.constant 0 : index
      %14 = vector.load %arg2[%c0_10, %c0_11] : memref<8x8xf32, #tpu.memory_space<vmem>>, vector<8x8xf32>
      tpu.vector_store %arg2[%c0_10, %c0_11], %13 {strides = array<i32>} : memref<8x8xf32, #tpu.memory_space<vmem>>, vector<8x8xf32>,
    } else {
    }
    return
  }
  func.func @transform_0(%arg0: i32) -> (i32, i32) {
    %c0_i32 = arith.constant 0 : i32
    %c0_i32_0 = arith.constant 0 : i32
    return %c0_i32, %arg0 : i32, i32
  }
  func.func @transform_1(%arg0: i32) -> (i32, i32) {
    %c0_i32 = arith.constant 0 : i32
    %c0_i32_0 = arith.constant 0 : i32
    %c0_i32_1 = arith.constant 0 : i32
    return %c0_i32, %c0_i32_0 : i32, i32
  }
}

</mosaic_0001>

<llo_original>
// kernel: tpu_custom_call.1
$region0: #{tpu_custom_call.1}
  #allocation0 [shape = 'u32[]', space=smem, size = 0x4, offset = 0x4, fixed_abs, tag = 'smem constant byte address 0x4 - core index']
  #allocation1 [shape = 'u32[144,128]{1,0:T(1,128)}', space=vmem, size = 0x12000, scoped, tag = 'internal scratch']
  #allocation2 [shape = 'f32[8,8]{1,0:T(8,128)}', space=vmem, size = 0x1000, scoped, tag = 'scratch operand']
  %s0 = inlined_call_operand.hbm [shape: f32[8,256], index: 0, kind: input, shape index: {}]
  %s1 = inlined_call_operand.hbm [shape: f32[8,8], index: 1, kind: output, shape index: {}]
  %s2 = sld [smem:[#allocation0]]
  $region49: #{tpu_custom_call.1} parent=0
    _
  %s4 = ssub.s32 1, %s2
  %s5 = scalar_select 0, %s4, %s2
  $region1: #{tpu_custom_call.1} parent=0
    #allocation3 [shape = 'u8[8192]{0}', space=vmem, size = 0x2000, scoped, tag = 'input window, operand 0']
    #allocation4 [shape = 's32[2]{0}', space=sflag, size = 0x8, scoped, tag = 'scoped memory for tpu_custom_call.1']
    #allocation5 [shape = 's32[2]{0}', space=sflag, size = 0x8, scoped, tag = 'scoped memory for tpu_custom_call.1']
    #allocation6 [shape = 'u8[4096]{0}', space=vmem, size = 0x1000, scoped, tag = 'output window, operand 0, single buffered']
    %6 = vsyncpa [#allocation4], 0
    %s7 = scalar_lea.sflag [#allocation4], 1
    %8 = vsyncpa %s7, 0
    %9 = vsyncpa [#allocation5], 0
    loop: start=0, step=1, limit=4
    $region2: #{tpu_custom_call.1} parent=1 // loop_pre_header
      _
    $region3: #{tpu_custom_call.1} parent=1 // loop_header
      %s11 = sphi 0, %s15
      %p12 = scmp.ge.s32.totalorder %s11, 4
      %s21 = sphi 0, %s23
      %s24 = sphi 0, %s21
      %s25 = sphi 0, %s24
      %s41 = sphi 0, %s25
      %s45 = sphi 0, %s45
      %s47 = sphi 0, %s45
      %s48 = sphi 0, %s47
      %s62 = sphi 0, %s48
    $region4: #{tpu_custom_call.1} parent=1 // loop_header_branch
      %14 = sbr.rel (%p12) target = $region8
    $region5: #{tpu_custom_call.1} parent=1 // loop_body
      %s16 = ssub.s32 %s11, 1
      %s17 = ssub.s32 %s11, 2
      %s18 = sadd.s32 %s11, 1
      %s19 = ssub.s32 %s11, %s18
      %p20 = scmp.eq.s32.totalorder %s19, 0
      %s22 = sadd.s32 %s21, 1
      %s23 = scalar_select %p20, %s21, %s22
      %p26 = pneg %p20
      %p27 = scmp.eq.s32.totalorder %s11, 1
      %p28 = por %p26, %p27
      %p29 = scmp.ne.s32.totalorder %s21, %s24
      %p30 = scmp.eq.s32.totalorder %s11, 0
      %p31 = por %p29, %p30
      %p32 = scmp.ne.s32.totalorder %s21, %s24
      %p33 = scmp.eq.s32.totalorder %s16, 1
      %p34 = por %p32, %p33
      %p35 = scmp.ne.s32.totalorder %s24, %s25
      %p36 = scmp.eq.s32.totalorder %s16, 0
      %p37 = por %p35, %p36
      %p38 = scmp.ne.s32.totalorder %s24, %s25
      %p39 = scmp.eq.s32.totalorder %s17, 1
      %p40 = por %p38, %p39
      %p42 = scmp.ne.s32.totalorder %s25, %s41
      %p43 = scmp.eq.s32.totalorder %s17, 0
      %p44 = por %p42, %p43
      %s46 = sadd.s32 %s45, 1
      %p49 = scmp.eq.s32.totalorder %s11, 1
      %p50 = scmp.ne.s32.totalorder %s45, %s47
      %p51 = scmp.eq.s32.totalorder %s11, 0
      %p52 = por %p50, %p51
      %p53 = scmp.ne.s32.totalorder %s45, %s47
      %p54 = scmp.eq.s32.totalorder %s16, 1
      %p55 = por %p53, %p54
      %p56 = scmp.ne.s32.totalorder %s47, %s48
      %p57 = scmp.eq.s32.totalorder %s16, 0
      %p58 = por %p56, %p57
      %p59 = scmp.ne.s32.totalorder %s47, %s48
      %p60 = scmp.eq.s32.totalorder %s17, 1
      %p61 = por %p59, %p60
      %p63 = scmp.ne.s32.totalorder %s48, %s62
      %p64 = scmp.eq.s32.totalorder %s17, 0
      %p65 = por %p63, %p64
      %p66 = scmp.le.s32.totalorder 1, %s11
      %p67 = scmp.lt.s32.totalorder %s11, 3
      %p68 = pnand %p66, %p67
      %p69 = pneg %p68
      // Predicated region
      $region9: #{tpu_custom_call.1} parent=5 // pred_check
        _
      $region10: #{tpu_custom_call.1} parent=5 // pred_check_branch
        %71 = sbr.rel (%p68) target = $region12
      $region11: #{tpu_custom_call.1} parent=5 // pred_region
        %s72 = ssub.s32 %s11, 1
      $region12: #{tpu_custom_call.1} parent=5 // pred_fallthru
        _
      %p73 = scmp.lt.s32.totalorder %s11, 2
      // Predicated region
      $region13: #{tpu_custom_call.1} parent=5 // pred_check
        %p74 = pneg %p73
      $region14: #{tpu_custom_call.1} parent=5 // pred_check_branch
        %76 = sbr.rel (%p74) target = $region16
      $region15: #{tpu_custom_call.1} parent=5 // pred_region
        // Predicated region
        $region17: #{tpu_custom_call.1} parent=15 // pred_check
          %p77 = pneg %p31
        $region18: #{tpu_custom_call.1} parent=15 // pred_check_branch
          %79 = sbr.rel (%p77) target = $region20
        $region19: #{tpu_custom_call.1} parent=15 // pred_region
          %s80 = sand.u32 %s21, 1
          %s81 = scalar_lea.sflag [#allocation4], %s80
          %s82 = sand.u32 %s21, 1
          %s83 = smul.addr %s82, 8
          %s84 = scalar_lea.vmem [#allocation3], %s83
          %s86 = ssub.s32 128, 128
          %87 = vsyncadd %s81, %s86
          %s88 = smul.addr %s11, 128
          %s89 = scalar_lea.hbm %s0, %s88
          %s91 = sshll.u32 %s84, 4
          %s92 = int_to_ptr.vmem [resolvable:$true] %s91
          %94 = dma.hbm_to_vmem [thread:$0]  %s89, 128, %s92, %s81
        $region20: #{tpu_custom_call.1} parent=15 // pred_fallthru
          _
      $region16: #{tpu_custom_call.1} parent=5 // pred_fallthru
        _
      %p95 = scmp.le.s32.totalorder 1, %s11
      %p96 = scmp.lt.s32.totalorder %s11, 3
      %p97 = pnand %p95, %p96
      %p98 = pneg %p97
      // Predicated region
      $region21: #{tpu_custom_call.1} parent=5 // pred_check
        _
      $region22: #{tpu_custom_call.1} parent=5 // pred_check_branch
        %100 = sbr.rel (%p97) target = $region24
      $region23: #{tpu_custom_call.1} parent=5 // pred_region
        %s101 = ssub.s32 %s11, 1
        %s102 = sand.u32 %s24, 1
        %s103 = scalar_lea.sflag [#allocation4], %s102
        %s104 = sand.u32 %s24, 1
        %s105 = smul.addr %s104, 8
        %s106 = scalar_lea.vmem [#allocation3], %s105
        // Predicated region
        $region25: #{tpu_custom_call.1} parent=23 // pred_check
          %p107 = pneg %p37
        $region26: #{tpu_custom_call.1} parent=23 // pred_check_branch
          %109 = sbr.rel (%p107) target = $region28
        $region27: #{tpu_custom_call.1} parent=23 // pred_region
          %110 = dma.done %s103, 128
        $region28: #{tpu_custom_call.1} parent=23 // pred_fallthru
          _
        %s111 = sand.u32 %s24, 1
        %s112 = scalar_lea.sflag [#allocation4], %s111
        %s113 = sand.u32 %s24, 1
        %s114 = smul.addr %s113, 8
        %s115 = scalar_lea.vmem [#allocation3], %s114
        %p116 = pneg %p37
        %p117 = pneg %p34
        %p118 = pneg %p58
        %p119 = pneg %p55
        %p120 = scmp.eq.s32.totalorder %s16, 0
        // Predicated region
        $region29: #{tpu_custom_call.1} parent=23 // pred_check
          %p121 = pneg %p120
        $region30: #{tpu_custom_call.1} parent=23 // pred_check_branch
          %123 = sbr.rel (%p121) target = $region32
        $region31: #{tpu_custom_call.1} parent=23 // pred_region
          %vm124 = vcmask 64512
          %125 = vst.msk [vmem:[#allocation2] sm:$0xff] %vm124, 0.0
        $region32: #{tpu_custom_call.1} parent=23 // pred_fallthru
          _
        %v126 = vld [vmem:[%s106] sm:$0xff]
        %v127 = vld [vmem:[#allocation2] sm:$0xff]
        %128 = vmatprep.subr.mxu0 0.0
        %129 = vmatpush1.xpose.msra.mxu0 %v126
        %130 = vmatprep.subr.mxu0 0.0
        %131 = vmatpush1.xpose.msra.mxu0 0.0
        %132 = vmatprep.subr.mxu0 0.0
        %133 = vmatpush1.xpose.msra.mxu0 0.0
        %134 = vmatprep.subr.mxu0 0.0
        %135 = vmatpush1.xpose.msra.mxu0 0.0
        %136 = vmatprep.subr.mxu0 0.0
        %137 = vmatpush1.xpose.msra.mxu0 0.0
        %138 = vmatprep.subr.mxu0 0.0
        %139 = vmatpush1.xpose.msra.mxu0 0.0
        %140 = vmatprep.subr.mxu0 0.0
        %141 = vmatpush1.xpose.msra.mxu0 0.0
        %142 = vmatprep.subr.mxu0 0.0
        %143 = vmatpush1.xpose.msra.mxu0 0.0
        %144 = vmatprep.subr.mxu0 0.0
        %145 = vmatpush1.xpose.msra.mxu0 0.0
        %146 = vmatprep.subr.mxu0 0.0
        %147 = vmatpush1.xpose.msra.mxu0 0.0
        %148 = vmatprep.subr.mxu0 0.0
        %149 = vmatpush1.xpose.msra.mxu0 0.0
        %150 = vmatprep.subr.mxu0 0.0
        %151 = vmatpush1.xpose.msra.mxu0 0.0
        %152 = vmatprep.subr.mxu0 0.0
        %153 = vmatpush1.xpose.msra.mxu0 0.0
        %154 = vmatprep.subr.mxu0 0.0
        %155 = vmatpush1.xpose.msra.mxu0 0.0
        %156 = vmatprep.subr.mxu0 0.0
        %157 = vmatpush1.xpose.msra.mxu0 0.0
        %158 = vmatprep.subr.mxu0 0.0
        %159 = vmatpush1.xpose.msra.mxu0 0.0
        %160 = vmatprep.subr.mxu0 0.0
        %161 = vmatpush1.xpose.msra.mxu0 0.0
        %162 = vmatprep.subr.mxu0 0.0
        %163 = vmatpush1.xpose.msra.mxu0 0.0
        %164 = vmatprep.subr.mxu0 0.0
        %165 = vmatpush1.xpose.msra.mxu0 0.0
        %166 = vmatprep.subr.mxu0 0.0
        %167 = vmatpush1.xpose.msra.mxu0 0.0
        %168 = vmatprep.subr.mxu0 0.0
        %169 = vmatpush1.xpose.msra.mxu0 0.0
        %170 = vmatprep.subr.mxu0 0.0
        %171 = vmatpush1.xpose.msra.mxu0 0.0
        %172 = vmatprep.subr.mxu0 0.0
        %173 = vmatpush1.xpose.msra.mxu0 0.0
        %174 = vmatprep.subr.mxu0 0.0
        %175 = vmatpush1.xpose.msra.mxu0 0.0
        %176 = vmatprep.subr.mxu0 0.0
        %177 = vmatpush1.xpose.msra.mxu0 0.0
        %178 = vmatprep.subr.mxu0 0.0
        %179 = vmatpush1.xpose.msra.mxu0 0.0
        %180 = vmatprep.subr.mxu0 0.0
        %181 = vmatpush1.xpose.msra.mxu0 0.0
        %182 = vmatprep.subr.mxu0 0.0
        %183 = vmatpush1.xpose.msra.mxu0 0.0
        %184 = vmatprep.subr.mxu0 0.0
        %185 = vmatpush1.xpose.msra.mxu0 0.0
        %186 = vmatprep.subr.mxu0 0.0
        %187 = vmatpush1.xpose.msra.mxu0 0.0
        %188 = vmatprep.subr.mxu0 0.0
        %189 = vmatpush1.xpose.msra.mxu0 0.0
        %190 = vmatprep.subr.mxu0 0.0
        %191 = vmatpush1.xpose.msra.mxu0 0.0
        %192 = vmatprep.mubr.f32.mxu0 0.0
        %193 = vmatmul.mubr.f32.gmra.mrb[0].mxu0 %v126
        %v194 = vpop.f32.mrb[0].mxu0
        %v195 = vadd.f32 0.0, %v194
        %v196 = vpop.f32.mrb[0].mxu0
        %197 = vdwg.mxu0
        %v198 = vadd.f32 %v127, %v195
        %vm199 = vcmask 64512
        %200 = vst.msk [vmem:[#allocation2] sm:$0xff] %vm199, %v198
        %p201 = scmp.eq.s32.totalorder %s16, 1
        // Predicated region
        $region33: #{tpu_custom_call.1} parent=23 // pred_check
          %p202 = pneg %p201
        $region34: #{tpu_custom_call.1} parent=23 // pred_check_branch
          %204 = sbr.rel (%p202) target = $region36
        $region35: #{tpu_custom_call.1} parent=23 // pred_region
          %v205 = vld [vmem:[#allocation2] sm:$0xff]
          %v206 = vmul.f32 %v205, 0.00048828125
          %207 = vst.msk [vmem:[#allocation6] sm:$0xff] %vm199, %v206
        $region36: #{tpu_custom_call.1} parent=23 // pred_fallthru
          _
        // Predicated region
        $region37: #{tpu_custom_call.1} parent=23 // pred_check
          %p208 = pneg %p55
        $region38: #{tpu_custom_call.1} parent=23 // pred_check_branch
          %210 = sbr.rel (%p208) target = $region40
        $region39: #{tpu_custom_call.1} parent=23 // pred_region
          %s212 = ssub.s32 128, 128
          %213 = vsyncadd [#allocation5], %s212
          %s215 = sshll.u32 [#allocation6], 4
          %s216 = int_to_ptr.vmem [resolvable:$true] %s215
          %218 = dma.vmem_to_hbm [thread:$0]  %s216, 128, %s1, [#allocation5]
        $region40: #{tpu_custom_call.1} parent=23 // pred_fallthru
          _
        // Predicated region
        $region41: #{tpu_custom_call.1} parent=23 // pred_check
          %p219 = pneg %p55
        $region42: #{tpu_custom_call.1} parent=23 // pred_check_branch
          %221 = sbr.rel (%p219) target = $region44
        $region43: #{tpu_custom_call.1} parent=23 // pred_region
          %222 = dma.done [#allocation5], 128
        $region44: #{tpu_custom_call.1} parent=23 // pred_fallthru
          _
      $region24: #{tpu_custom_call.1} parent=5 // pred_fallthru
        _
      %p223 = scmp.le.s32.totalorder 2, %s11
      // Predicated region
      $region45: #{tpu_custom_call.1} parent=5 // pred_check
        %p224 = pneg %p223
      $region46: #{tpu_custom_call.1} parent=5 // pred_check_branch
        %226 = sbr.rel (%p224) target = $region48
      $region47: #{tpu_custom_call.1} parent=5 // pred_region
        %s227 = ssub.s32 %s11, 2
      $region48: #{tpu_custom_call.1} parent=5 // pred_fallthru
        _
    $region6: #{tpu_custom_call.1} parent=1 // loop_footer
      %s15 = sadd.s32 1, %s11
    $region7: #{tpu_custom_call.1} parent=1 // loop_footer_branch
      %10 = sbr.rel target = $region3
    $region8: #{tpu_custom_call.1} parent=1 // loop_exit
      _
    %228 = vsyncpa [#allocation4], 1
    %s229 = scalar_lea.sflag [#allocation4], 1
    %230 = vsyncpa %s229, 1
    %231 = vsyncpa [#allocation5], 1
    %s232 = scalar_lea.sflag [#allocation5], 1
    %233 = vsyncpa %s232, 1

</llo_original>
